<compile_context>
chip_gen: v6e
topology: v6e:2x2x1
jax: 0.10.0
libtpu: 0.0.40
codegen_flags: <defaults>
</compile_context>

<pallas_src>
import jax
import jax.numpy as jnp
from jax.experimental import pallas as pl
from jax.experimental.pallas import tpu as pltpu


def _log_sigmoid(x):
    # numerically-stable logsigmoid, matches torch.nn.functional.logsigmoid
    return jnp.minimum(x, 0.0) - jnp.log1p(jnp.exp(-jnp.abs(x)))


def _make_cbow_kernel(total_batch: int, context: int):
    inv_ctx = 1.0 / float(context)

    def kernel(xp_ref, xn_ref, y_ref, emb_v_ref, emb_u_ref, partial_ref):
        blk = pl.program_id(0)

        xp = xp_ref[...]                                    # (Bt, C) int32
        xn = xn_ref[...]                                    # (Bt, N) int32
        yy = y_ref[...]                                     # (Bt, 1) int32
        emb_v = emb_v_ref[...].astype(jnp.float32)          # (V, E)
        emb_u = emb_u_ref[...].astype(jnp.float32)          # (V, E)

        bt, c = xp.shape
        n = xn.shape[1]
        v = emb_v.shape[0]

        # rows past the true batch (padded final block) contribute nothing
        row_ids = blk * bt + jax.lax.broadcasted_iota(jnp.int32, (bt, 1), 0)
        row_valid = (row_ids < total_batch).astype(jnp.float32)         # (Bt,1)

        # ctx_w[b, w] = (#occurrences of word w among b's context words) / C
        ctx_onehot = (
            xp[:, :, None]
            == jax.lax.broadcasted_iota(jnp.int32, (bt, c, v), 2)
        ).astype(jnp.float32)                                           # (Bt,C,V)
        ctx_w = jnp.sum(ctx_onehot, axis=1) * inv_ctx                   # (Bt,V)

        # h = mean of context embeddings  ->  MXU matmul
        h = jnp.dot(ctx_w, emb_v, preferred_element_type=jnp.float32)   # (Bt,E)

        # scores[b, w] = <emb_u[w], h[b]>  ->  MXU matmul, transposed rhs
        scores = jax.lax.dot_general(
            h, emb_u, (((1,), (1,)), ((), ())),
            preferred_element_type=jnp.float32)                         # (Bt,V)

        ls_pos = _log_sigmoid(scores)                                   # (Bt,V)
        ls_neg = _log_sigmoid(-scores)                                  # (Bt,V)

        # positive target selection mask (exactly one word per row)
        pos_mask = (
            yy == jax.lax.broadcasted_iota(jnp.int32, (bt, v), 1)
        ).astype(jnp.float32)                                           # (Bt,V)

        # negative-sample multiplicities per vocab word (handles duplicates)
        neg_counts = jnp.sum(
            (xn[:, :, None]
             == jax.lax.broadcasted_iota(jnp.int32, (bt, n, v), 2)
             ).astype(jnp.float32),
            axis=1)                                                     # (Bt,V)

        per_row = jnp.sum(pos_mask * ls_pos + neg_counts * ls_neg,
                          axis=1, keepdims=True)                        # (Bt,1)
        block_sum = jnp.sum(per_row * row_valid)                        # scalar

        # lane-dense broadcast store (no masked vst.msk partial stores)
        partial_ref[...] = jnp.full(partial_ref.shape, block_sum,
                                    dtype=jnp.float32)

    return kernel


def cbow_sampling_loss(emb_v, emb_u, x_positive, x_negative, y, *,
                       batch_tile=512):
    B, C = x_positive.shape
    N = x_negative.shape[1]
    V, E = emb_v.shape

    bt = min(B, batch_tile)
    num_blocks = pl.cdiv(B, bt)

    xp = x_positive.astype(jnp.int32)
    xn = x_negative.astype(jnp.int32)
    y2 = y.astype(jnp.int32).reshape(B, 1)

    kernel = _make_cbow_kernel(total_batch=B, context=C)

    itemsize = jnp.dtype(emb_v.dtype).itemsize
    cost = pl.CostEstimate(
        flops=4 * B * V * E + 8 * B * V,
        transcendentals=4 * B * V,
        bytes_accessed=(4 * B * (C + N + 1)            # int32 indices
                        + itemsize * 2 * V * E         # both tables, read once
                        + 4 * num_blocks * 8 * 128),   # partial-sum tiles
    )

    partials = pl.pallas_call(
        kernel,
        out_shape=jax.ShapeDtypeStruct((num_blocks, 8, 128), jnp.float32),
        grid=(num_blocks,),
        in_specs=[
            pl.BlockSpec((bt, C), lambda i: (i, 0)),
            pl.BlockSpec((bt, N), lambda i: (i, 0)),
            pl.BlockSpec((bt, 1), lambda i: (i, 0)),
            pl.BlockSpec((V, E), lambda i: (0, 0)),   # table stays resident in
            pl.BlockSpec((V, E), lambda i: (0, 0)),   # VMEM (same block always)
        ],
        out_specs=pl.BlockSpec((1, 8, 128), lambda i: (i, 0, 0)),
        compiler_params=pltpu.CompilerParams(
            dimension_semantics=("parallel",),
        ),
        cost_estimate=cost,
    )(xp, xn, y2, emb_v, emb_u)

    # each block broadcast its scalar partial sum over its (8,128) tile;
    # divide by the TRUE total batch here (not the per-block batch).
    return -jnp.sum(partials[:, 0, 0]) / B


def cbow_sampling_loss_ref(emb_v, emb_u, x_positive, x_negative, y):
    # pure-JAX reference of the PyTorch forward, for a silent correctness check
    h = jnp.mean(emb_v[x_positive], axis=1)                               # (B, E)
    pos = jax.nn.log_sigmoid(jnp.sum(emb_u[y] * h, axis=-1))              # (B,)
    neg_s = -jnp.sum(emb_u[x_negative] * h[:, None, :], axis=-1)          # (B, N)
    neg = jnp.sum(jax.nn.log_sigmoid(neg_s), axis=1)                      # (B,)
    return -jnp.mean(pos + neg)


if __name__ == "__main__":
    vocab_size = 50
    embedding_size = 32
    batch = 8
    context = 4       # CBOW context window size (x_positive.shape[1])
    num_neg = 5       # negative samples per example (x_negative.shape[1])

    key = jax.random.PRNGKey(0)
    k_v, k_u, k_xp, k_xn, k_y = jax.random.split(key, 5)

    # nn.Embedding default init: weights ~ N(0, 1)
    emb_v = jax.random.normal(k_v, (vocab_size, embedding_size), dtype=jnp.float32)
    emb_u = jax.random.normal(k_u, (vocab_size, embedding_size), dtype=jnp.float32)

    x_positive = jax.random.randint(k_xp, (batch, context), 0, vocab_size, dtype=jnp.int32)
    x_negative = jax.random.randint(k_xn, (batch, num_neg), 0, vocab_size, dtype=jnp.int32)
    y = jax.random.randint(k_y, (batch,), 0, vocab_size, dtype=jnp.int32)

    loss = jax.block_until_ready(
        cbow_sampling_loss(emb_v, emb_u, x_positive, x_negative, y)
    )
    ref = jax.block_until_ready(
        cbow_sampling_loss_ref(emb_v, emb_u, x_positive, x_negative, y)
    )
    assert jnp.allclose(loss, ref, rtol=1e-5, atol=1e-5), (loss, ref)

    print("KERNEL_OK")
</pallas_src>

<mosaic_0001>
module attributes {stable_mosaic.version = 11 : i64} {
  func.func @kernel(%arg0: i32, %arg1: memref<8x4xi32, #tpu.memory_space<vmem>>, %arg2: memref<8x5xi32, #tpu.memory_space<vmem>>, %arg3: memref<8x1xi32, #tpu.memory_space<vmem>>, %arg4: memref<50x32xf32, #tpu.memory_space<vmem>>, %arg5: memref<50x32xf32, #tpu.memory_space<vmem>>, %arg6: memref<1x8x128xf32, #tpu.memory_space<vmem>>) attributes {dimension_semantics = [#tpu.dimension_semantics<parallel>], iteration_bounds = array<i64: 1>, scalar_prefetch = 0 : i64, scratch_operands = 0 : i64, tpu.core_type = #tpu.core_type<tc>, window_params = [{transform_indices = @transform_0, window_bounds = array<i64: 8, 4>}, {transform_indices = @transform_1, window_bounds = array<i64: 8, 5>}, {transform_indices = @transform_2, window_bounds = array<i64: 8, 1>}, {pipeline_mode = #tpu.pipeline_mode<synchronous>, transform_indices = @transform_3, window_bounds = array<i64: 50, 32>}, {pipeline_mode = #tpu.pipeline_mode<synchronous>, transform_indices = @transform_4, window_bounds = array<i64: 50, 32>}, {transform_indices = @transform_5, window_bounds = array<i64: 1, 8, 128>}]} {
    %c0 = arith.constant 0 : index
    %c0_0 = arith.constant 0 : index
    %0 = vector.load %arg1[%c0, %c0_0] : memref<8x4xi32, #tpu.memory_space<vmem>>, vector<8x4xi32>
    %c0_1 = arith.constant 0 : index
    %c0_2 = arith.constant 0 : index
    %1 = vector.load %arg2[%c0_1, %c0_2] : memref<8x5xi32, #tpu.memory_space<vmem>>, vector<8x5xi32>
    %c0_3 = arith.constant 0 : index
    %c0_4 = arith.constant 0 : index
    %2 = vector.load %arg3[%c0_3, %c0_4] : memref<8x1xi32, #tpu.memory_space<vmem>>, vector<8x1xi32>
    %c0_5 = arith.constant 0 : index
    %c0_6 = arith.constant 0 : index
    %3 = vector.load %arg4[%c0_5, %c0_6] : memref<50x32xf32, #tpu.memory_space<vmem>>, vector<50x32xf32>
    %c0_7 = arith.constant 0 : index
    %c0_8 = arith.constant 0 : index
    %4 = vector.load %arg5[%c0_7, %c0_8] : memref<50x32xf32, #tpu.memory_space<vmem>>, vector<50x32xf32>
    %c8_i32 = arith.constant 8 : i32
    %5 = arith.muli %arg0, %c8_i32 : i32
    %6 = tpu.iota {dimensions = array<i32: 0>} : vector<8x1xi32>
    %7 = vector.broadcast %5 : i32 to vector<8x1xi32>
    %8 = arith.addi %7, %6 : vector<8x1xi32>
    %c8_i32_9 = arith.constant 8 : i32
    %9 = vector.broadcast %c8_i32_9 : i32 to vector<8x1xi32>
    %10 = arith.cmpi slt, %8, %9 : vector<8x1xi32>
    %11 = arith.extui %10 : vector<8x1xi1> to vector<8x1xi32>
    %12 = arith.sitofp %11 : vector<8x1xi32> to vector<8x1xf32>
    %13 = vector.shape_cast %0 : vector<8x4xi32> to vector<8x4x1xi32>
    %14 = tpu.iota {dimensions = array<i32: 2>} : vector<8x4x50xi32>
    %15 = vector.broadcast %13 : vector<8x4x1xi32> to vector<8x4x50xi32>
    %16 = arith.cmpi eq, %15, %14 : vector<8x4x50xi32>
    %17 = arith.extui %16 : vector<8x4x50xi1> to vector<8x4x50xi32>
    %18 = arith.sitofp %17 : vector<8x4x50xi32> to vector<8x4x50xf32>
    %cst = arith.constant dense<0.000000e+00> : vector<8x50xf32>
    %19 = vector.multi_reduction <add>, %18, %cst [1] : vector<8x4x50xf32> to vector<8x50xf32>
    %cst_10 = arith.constant 2.500000e-01 : f32
    %20 = vector.broadcast %cst_10 : f32 to vector<8x50xf32>
    %21 = arith.mulf %19, %20 : vector<8x50xf32>
    %cst_11 = arith.constant dense<0.000000e+00> : vector<8x32xf32>
    %22 = tpu.matmul %21, %3, %cst_11 {dimension_numbers = #tpu.dot_dimension_numbers<[1], [0], [0], [1], [0, 0, 1, 1], [], []>} : vector<8x50xf32>, vector<50x32xf32>, vector<8x32xf32> -> vector<8x32xf32>
    %cst_12 = arith.constant dense<0.000000e+00> : vector<8x50xf32>
    %23 = tpu.matmul %22, %4, %cst_12 {dimension_numbers = #tpu.dot_dimension_numbers<[1], [1], [0], [0], [0, 0, 1, 0], [], []>} : vector<8x32xf32>, vector<50x32xf32>, vector<8x50xf32> -> vector<8x50xf32>
    %cst_13 = arith.constant 0.000000e+00 : f32
    %24 = vector.broadcast %cst_13 : f32 to vector<8x50xf32>
    %25 = arith.minimumf %23, %24 : vector<8x50xf32>
    %26 = math.absf %23 : vector<8x50xf32>
    %cst_14 = arith.constant 0.000000e+00 : f32
    %27 = vector.broadcast %cst_14 : f32 to vector<8x50xf32>
    %28 = arith.subf %27, %26 : vector<8x50xf32>
    %29 = math.exp %28 : vector<8x50xf32>
    %30 = math.log1p %29 : vector<8x50xf32>
    %31 = arith.subf %25, %30 : vector<8x50xf32>
    %cst_15 = arith.constant 0.000000e+00 : f32
    %32 = vector.broadcast %cst_15 : f32 to vector<8x50xf32>
    %33 = arith.subf %32, %23 : vector<8x50xf32>
    %cst_16 = arith.constant 0.000000e+00 : f32
    %34 = vector.broadcast %cst_16 : f32 to vector<8x50xf32>
    %35 = arith.minimumf %33, %34 : vector<8x50xf32>
    %36 = math.absf %33 : vector<8x50xf32>
    %cst_17 = arith.constant 0.000000e+00 : f32
    %37 = vector.broadcast %cst_17 : f32 to vector<8x50xf32>
    %38 = arith.subf %37, %36 : vector<8x50xf32>
    %39 = math.exp %38 : vector<8x50xf32>
    %40 = math.log1p %39 : vector<8x50xf32>
    %41 = arith.subf %35, %40 : vector<8x50xf32>
    %42 = tpu.iota {dimensions = array<i32: 1>} : vector<8x50xi32>
    %43 = vector.broadcast %2 : vector<8x1xi32> to vector<8x50xi32>
    %44 = arith.cmpi eq, %43, %42 : vector<8x50xi32>
    %45 = arith.extui %44 : vector<8x50xi1> to vector<8x50xi32>
    %46 = arith.sitofp %45 : vector<8x50xi32> to vector<8x50xf32>
    %47 = vector.shape_cast %1 : vector<8x5xi32> to vector<8x5x1xi32>
    %48 = tpu.iota {dimensions = array<i32: 2>} : vector<8x5x50xi32>
    %49 = vector.broadcast %47 : vector<8x5x1xi32> to vector<8x5x50xi32>
    %50 = arith.cmpi eq, %49, %48 : vector<8x5x50xi32>
    %51 = arith.extui %50 : vector<8x5x50xi1> to vector<8x5x50xi32>
    %52 = arith.sitofp %51 : vector<8x5x50xi32> to vector<8x5x50xf32>
    %cst_18 = arith.constant dense<0.000000e+00> : vector<8x50xf32>
    %53 = vector.multi_reduction <add>, %52, %cst_18 [1] : vector<8x5x50xf32> to vector<8x50xf32>
    %54 = arith.mulf %46, %31 : vector<8x50xf32>
    %55 = arith.mulf %53, %41 : vector<8x50xf32>
    %56 = arith.addf %54, %55 : vector<8x50xf32>
    %cst_19 = arith.constant dense<0.000000e+00> : vector<8xf32>
    %57 = vector.multi_reduction <add>, %56, %cst_19 [1] : vector<8x50xf32> to vector<8xf32>
    %58 = vector.shape_cast %57 : vector<8xf32> to vector<8x1xf32>
    %59 = arith.mulf %58, %12 : vector<8x1xf32>
    %60 = vector.shape_cast %59 : vector<8x1xf32> to vector<1x8x1xf32>
    %cst_20 = arith.constant dense<0.000000e+00> : vector<1xf32>
    %61 = vector.multi_reduction <add>, %60, %cst_20 [1, 2] : vector<1x8x1xf32> to vector<1xf32>
    %62 = vector.shape_cast %61 : vector<1xf32> to vector<1x1x1xf32>
    %63 = vector.extract %62[0, 0, 0] : f32 from vector<1x1x1xf32>
    %64 = vector.broadcast %63 : f32 to vector<1x8x128xf32>
    %c0_21 = arith.constant 0 : index
    %c0_22 = arith.constant 0 : index
    %c0_23 = arith.constant 0 : index
    %65 = vector.load %arg6[%c0_21, %c0_22, %c0_23] : memref<1x8x128xf32, #tpu.memory_space<vmem>>, vector<1x8x128xf32>
    tpu.vector_store %arg6[%c0_21, %c0_22, %c0_23], %64 {strides = array<i32>} : memref<1x8x128xf32, #tpu.memory_space<vmem>>, vector<1x8x128xf32>,
    return
  }
  func.func @transform_0(%arg0: i32) -> (i32, i32) {
    %c0_i32 = arith.constant 0 : i32
    %c0_i32_0 = arith.constant 0 : i32
    return %arg0, %c0_i32 : i32, i32
  }
  func.func @transform_1(%arg0: i32) -> (i32, i32) {
    %c0_i32 = arith.constant 0 : i32
    %c0_i32_0 = arith.constant 0 : i32
    return %arg0, %c0_i32 : i32, i32
  }
  func.func @transform_2(%arg0: i32) -> (i32, i32) {
    %c0_i32 = arith.constant 0 : i32
    %c0_i32_0 = arith.constant 0 : i32
    return %arg0, %c0_i32 : i32, i32
  }
  func.func @transform_3(%arg0: i32) -> (i32, i32) {
    %c0_i32 = arith.constant 0 : i32
    %c0_i32_0 = arith.constant 0 : i32
    %c0_i32_1 = arith.constant 0 : i32
    return %c0_i32, %c0_i32_0 : i32, i32
  }
  func.func @transform_4(%arg0: i32) -> (i32, i32) {
    %c0_i32 = arith.constant 0 : i32
    %c0_i32_0 = arith.constant 0 : i32
    %c0_i32_1 = arith.constant 0 : i32
    return %c0_i32, %c0_i32_0 : i32, i32
  }
  func.func @transform_5(%arg0: i32) -> (i32, i32, i32) {
    %c0_i32 = arith.constant 0 : i32
    %c0_i32_0 = arith.constant 0 : i32
    %c0_i32_1 = arith.constant 0 : i32
    return %arg0, %c0_i32, %c0_i32_0 : i32, i32, i32
  }
}

</mosaic_0001>

<llo_original>
// kernel: tpu_custom_call.1
$region0: #{tpu_custom_call.1}
  #allocation0 [shape = 'u32[]', space=smem, size = 0x4, offset = 0x4, fixed_abs, tag = 'smem constant byte address 0x4 - core index']
  #allocation1 [shape = 'u32[144,128]{1,0:T(1,128)}', space=vmem, size = 0x12000, scoped, tag = 'internal scratch']
  %s0 = inlined_call_operand.vmem [shape: s32[8,4], index: 0, kind: input, shape index: {}]
  %s1 = inlined_call_operand.vmem [shape: s32[8,5], index: 1, kind: input, shape index: {}]
  %s2 = inlined_call_operand.vmem [shape: s32[8,1], index: 2, kind: input, shape index: {}]
  %s3 = inlined_call_operand.vmem [shape: f32[50,32], index: 3, kind: input, shape index: {}]
  %s4 = inlined_call_operand.vmem [shape: f32[50,32], index: 4, kind: input, shape index: {}]
  %s5 = inlined_call_operand.hbm [shape: f32[1,8,128], index: 5, kind: output, shape index: {}]
  %s6 = sld [smem:[#allocation0]]
  $region30: #{tpu_custom_call.1} parent=0
    _
  %s8 = ssub.s32 1, %s6
  %s9 = scalar_select 0, %s8, %s6
  $region1: #{tpu_custom_call.1} parent=0
    #allocation2 [shape = 'u8[4096]{0}', space=vmem, size = 0x1000, scoped, tag = 'output window, operand 0, single buffered']
    #allocation3 [shape = 's32[1]{0}', space=sflag, size = 0x4, scoped, tag = 'scoped memory for tpu_custom_call.1']
    %10 = vsyncpa [#allocation3], 0
    // Predicated region
    $region2: #{tpu_custom_call.1} parent=1 // pred_check
      _
    $region3: #{tpu_custom_call.1} parent=1 // pred_check_branch
      %12 = sbr.rel (0) target = $region5
    $region4: #{tpu_custom_call.1} parent=1 // pred_region
      _
    $region5: #{tpu_custom_call.1} parent=1 // pred_fallthru
      _
    // Predicated region
    $region6: #{tpu_custom_call.1} parent=1 // pred_check
      _
    $region7: #{tpu_custom_call.1} parent=1 // pred_check_branch
      %14 = sbr.rel (0) target = $region9
    $region8: #{tpu_custom_call.1} parent=1 // pred_region
      _
    $region9: #{tpu_custom_call.1} parent=1 // pred_fallthru
      _
    // Predicated region
    $region10: #{tpu_custom_call.1} parent=1 // pred_check
      _
    $region11: #{tpu_custom_call.1} parent=1 // pred_check_branch
      %16 = sbr.rel (0) target = $region13
    $region12: #{tpu_custom_call.1} parent=1 // pred_region
      _
    $region13: #{tpu_custom_call.1} parent=1 // pred_fallthru
      _
    // Predicated region
    $region14: #{tpu_custom_call.1} parent=1 // pred_check
      _
    $region15: #{tpu_custom_call.1} parent=1 // pred_check_branch
      %18 = sbr.rel (0) target = $region17
    $region16: #{tpu_custom_call.1} parent=1 // pred_region
      _
    $region17: #{tpu_custom_call.1} parent=1 // pred_fallthru
      _
    // Predicated region
    $region18: #{tpu_custom_call.1} parent=1 // pred_check
      _
    $region19: #{tpu_custom_call.1} parent=1 // pred_check_branch
      %20 = sbr.rel (0) target = $region21
    $region20: #{tpu_custom_call.1} parent=1 // pred_region
      _
    $region21: #{tpu_custom_call.1} parent=1 // pred_fallthru
      _
    %v21 = vld [vmem:[%s0] sm:$0xff]
    %v22 = vld [vmem:[%s1] sm:$0xff]
    %v23 = vld [vmem:[%s2] sm:$0xff]
    %v24 = vld [vmem:[%s3] sm:$0xff]
    %v25 = vld [vmem:[%s3 + $0x8] sm:$0xff]
    %v26 = vld [vmem:[%s3 + $0x10] sm:$0xff]
    %v27 = vld [vmem:[%s3 + $0x18] sm:$0xff]
    %v28 = vld [vmem:[%s3 + $0x20] sm:$0xff]
    %v29 = vld [vmem:[%s3 + $0x28] sm:$0xff]
    %v30 = vld [vmem:[%s3 + $0x30] sm:$0x3]
    %v31 = vld [vmem:[%s4] sm:$0xff]
    %v32 = vld [vmem:[%s4 + $0x8] sm:$0xff]
    %v33 = vld [vmem:[%s4 + $0x10] sm:$0xff]
    %v34 = vld [vmem:[%s4 + $0x18] sm:$0xff]
    %v35 = vld [vmem:[%s4 + $0x20] sm:$0xff]
    %v36 = vld [vmem:[%s4 + $0x28] sm:$0xff]
    %v37 = vld [vmem:[%s4 + $0x30] sm:$0x3]
    %s38 = smul.u32 0, 8
    %v39 = vlaneseq
    %v40 = vshrl.u32 %v39, 7
    %v41 = vstv %s38
    %v42 = vadd.s32 %v41, %v40
    %vm43 = vcmp.lt.s32.totalorder %v42, 8
    %v44 = vsel %vm43, 1, 0
    %v45 = vcvt.s32.f32 %v44
    %v46 = vlaneseq
    %v47 = vshrl.u32 %v46, 7
    %v48 = vsub.s32 0, %v47
    %v49 = vrot.slane %v21, %v48
    %51 = vbcast.lane.b32.xlu0 %v49, 256
    %v52 = vpop.permute.xlu0 %51
    %v53 = vlaneseq
    %v54 = vshrl.u32 %v53, 7
    %v55 = vsub.s32 1, %v54
    %v56 = vrot.slane %v21, %v55
    %58 = vbcast.lane.b32.xlu0 %v56, 256
    %v59 = vpop.permute.xlu0 %58
    %v60 = vlaneseq
    %v61 = vshrl.u32 %v60, 7
    %v62 = vsub.s32 2, %v61
    %v63 = vrot.slane %v21, %v62
    %65 = vbcast.lane.b32.xlu0 %v63, 256
    %v66 = vpop.permute.xlu0 %65
    %v67 = vlaneseq
    %v68 = vshrl.u32 %v67, 7
    %v69 = vsub.s32 3, %v68
    %v70 = vrot.slane %v21, %v69
    %72 = vbcast.lane.b32.xlu0 %v70, 256
    %v73 = vpop.permute.xlu0 %72
    %v74 = vlaneseq
    %v75 = vshrl.u32 %v74, 7
    %v76 = vsub.s32 4, %v75
    %v77 = vrot.slane %v21, %v76
    %79 = vbcast.lane.b32.xlu0 %v77, 256
    %v80 = vpop.permute.xlu0 %79
    %v81 = vlaneseq
    %v82 = vshrl.u32 %v81, 7
    %v83 = vsub.s32 5, %v82
    %v84 = vrot.slane %v21, %v83
    %86 = vbcast.lane.b32.xlu0 %v84, 256
    %v87 = vpop.permute.xlu0 %86
    %v88 = vlaneseq
    %v89 = vshrl.u32 %v88, 7
    %v90 = vsub.s32 6, %v89
    %v91 = vrot.slane %v21, %v90
    %93 = vbcast.lane.b32.xlu0 %v91, 256
    %v94 = vpop.permute.xlu0 %93
    %v95 = vlaneseq
    %v96 = vshrl.u32 %v95, 7
    %v97 = vsub.s32 7, %v96
    %v98 = vrot.slane %v21, %v97
    %100 = vbcast.lane.b32.xlu0 %v98, 256
    %v101 = vpop.permute.xlu0 %100
    %v102 = vlaneseq
    %v103 = vand.u32 %v102, 127
    %vm104 = vcmp.eq.s32.totalorder %v52, %v103
    %vm105 = vcmp.eq.s32.totalorder %v59, %v103
    %vm106 = vcmp.eq.s32.totalorder %v66, %v103
    %vm107 = vcmp.eq.s32.totalorder %v73, %v103
    %vm108 = vcmp.eq.s32.totalorder %v80, %v103
    %vm109 = vcmp.eq.s32.totalorder %v87, %v103
    %vm110 = vcmp.eq.s32.totalorder %v94, %v103
    %vm111 = vcmp.eq.s32.totalorder %v101, %v103
    %v112 = vsel %vm104, 1, 0
    %v113 = vsel %vm105, 1, 0
    %v114 = vsel %vm106, 1, 0
    %v115 = vsel %vm107, 1, 0
    %v116 = vsel %vm108, 1, 0
    %v117 = vsel %vm109, 1, 0
    %v118 = vsel %vm110, 1, 0
    %v119 = vsel %vm111, 1, 0
    %v120 = vcvt.s32.f32 %v112
    %v121 = vcvt.s32.f32 %v113
    %v122 = vcvt.s32.f32 %v114
    %v123 = vcvt.s32.f32 %v115
    %v124 = vcvt.s32.f32 %v116
    %v125 = vcvt.s32.f32 %v117
    %v126 = vcvt.s32.f32 %v118
    %v127 = vcvt.s32.f32 %v119
    %vm128 = vcmask 404480
    %v129 = vsel %vm128, %v120, 0.0
    %v130 = vrot.slane %v129, 4
    %v131 = vadd.f32 %v129, %v130
    %v132 = vrot.slane %v131, 2
    %v133 = vadd.f32 %v131, %v132
    %v134 = vrot.slane %v133, 1
    %v135 = vadd.f32 %v133, %v134
    %v136 = vsel %vm128, %v121, 0.0
    %v137 = vrot.slane %v136, 4
    %v138 = vadd.f32 %v136, %v137
    %v139 = vrot.slane %v138, 2
    %v140 = vadd.f32 %v138, %v139
    %v141 = vrot.slane %v140, 1
    %v142 = vadd.f32 %v140, %v141
    %v143 = vsel %vm128, %v122, 0.0
    %v144 = vrot.slane %v143, 4
    %v145 = vadd.f32 %v143, %v144
    %v146 = vrot.slane %v145, 2
    %v147 = vadd.f32 %v145, %v146
    %v148 = vrot.slane %v147, 1
    %v149 = vadd.f32 %v147, %v148
    %v150 = vsel %vm128, %v123, 0.0
    %v151 = vrot.slane %v150, 4
    %v152 = vadd.f32 %v150, %v151
    %v153 = vrot.slane %v152, 2
    %v154 = vadd.f32 %v152, %v153
    %v155 = vrot.slane %v154, 1
    %v156 = vadd.f32 %v154, %v155
    %v157 = vsel %vm128, %v124, 0.0
    %v158 = vrot.slane %v157, 4
    %v159 = vadd.f32 %v157, %v158
    %v160 = vrot.slane %v159, 2
    %v161 = vadd.f32 %v159, %v160
    %v162 = vrot.slane %v161, 1
    %v163 = vadd.f32 %v161, %v162
    %v164 = vsel %vm128, %v125, 0.0
    %v165 = vrot.slane %v164, 4
    %v166 = vadd.f32 %v164, %v165
    %v167 = vrot.slane %v166, 2
    %v168 = vadd.f32 %v166, %v167
    %v169 = vrot.slane %v168, 1
    %v170 = vadd.f32 %v168, %v169
    %v171 = vsel %vm128, %v126, 0.0
    %v172 = vrot.slane %v171, 4
    %v173 = vadd.f32 %v171, %v172
    %v174 = vrot.slane %v173, 2
    %v175 = vadd.f32 %v173, %v174
    %v176 = vrot.slane %v175, 1
    %v177 = vadd.f32 %v175, %v176
    %v178 = vsel %vm128, %v127, 0.0
    %v179 = vrot.slane %v178, 4
    %v180 = vadd.f32 %v178, %v179
    %v181 = vrot.slane %v180, 2
    %v182 = vadd.f32 %v180, %v181
    %v183 = vrot.slane %v182, 1
    %v184 = vadd.f32 %v182, %v183
    %v185 = vmul.f32 %v135, 0.25
    %v186 = vmul.f32 %v142, 0.25
    %v187 = vmul.f32 %v149, 0.25
    %v188 = vmul.f32 %v156, 0.25
    %v189 = vmul.f32 %v163, 0.25
    %v190 = vmul.f32 %v170, 0.25
    %v191 = vmul.f32 %v177, 0.25
    %v192 = vmul.f32 %v184, 0.25
    %vm201 = vcmask 1041409
    %v202 = vsel %vm201, %v186, %v185
    %vm203 = vcmask 1042434
    %v204 = vsel %vm203, %v187, %v202
    %vm205 = vcmask 1043459
    %v206 = vsel %vm205, %v188, %v204
    %vm207 = vcmask 1044484
    %v208 = vsel %vm207, %v189, %v206
    %vm209 = vcmask 1045509
    %v210 = vsel %vm209, %v190, %v208
    %vm211 = vcmask 1046534
    %v212 = vsel %vm211, %v191, %v210
    %vm213 = vcmask 1047559
    %v214 = vsel %vm213, %v192, %v212
    %vm215 = vcmask 408576
    %v216 = vsel %vm215, %v214, 0
    %vm218 = vcmask 1041408
    %v220 = vsel %vm218, %v30, 0
    %222 = vmatprep.subr.mxu0 0.0
    %223 = vmatpush1.msra.mxu0 0.0
    %224 = vmatprep.subr.mxu0 0.0
    %225 = vmatpush1.msra.mxu0 0.0
    %226 = vmatprep.subr.mxu0 0.0
    %227 = vmatpush1.msra.mxu0 0.0
    %228 = vmatprep.subr.mxu0 0.0
    %229 = vmatpush1.msra.mxu0 0.0
    %230 = vmatprep.subr.mxu0 0.0
    %231 = vmatpush1.msra.mxu0 0.0
    %232 = vmatprep.subr.mxu0 0.0
    %233 = vmatpush1.msra.mxu0 0.0
    %234 = vmatprep.subr.mxu0 0.0
    %235 = vmatpush1.msra.mxu0 0.0
    %236 = vmatprep.subr.mxu0 0.0
    %237 = vmatpush1.msra.mxu0 0.0
    %238 = vmatprep.subr.mxu0 0.0
    %239 = vmatpush1.msra.mxu0 0.0
    %240 = vmatprep.subr.mxu0 0.0
    %241 = vmatpush1.msra.mxu0 %v220
    %242 = vmatprep.subr.mxu0 0.0
    %243 = vmatpush1.msra.mxu0 %v29
    %244 = vmatprep.subr.mxu0 0.0
    %245 = vmatpush1.msra.mxu0 %v28
    %246 = vmatprep.subr.mxu0 0.0
    %247 = vmatpush1.msra.mxu0 %v27
    %248 = vmatprep.subr.mxu0 0.0
    %249 = vmatpush1.msra.mxu0 %v26
    %250 = vmatprep.subr.mxu0 0.0
    %251 = vmatpush1.msra.mxu0 %v25
    %252 = vmatprep.subr.mxu0 0.0
    %253 = vmatpush1.msra.mxu0 %v24
    %254 = vmatprep.subr.mxu0 0.0
    %255 = vmatpush2.msra.mxu0 0.0
    %256 = vmatprep.subr.mxu0 0.0
    %257 = vmatpush2.msra.mxu0 0.0
    %258 = vmatprep.subr.mxu0 0.0
    %259 = vmatpush2.msra.mxu0 0.0
    %260 = vmatprep.subr.mxu0 0.0
    %261 = vmatpush2.msra.mxu0 0.0
    %262 = vmatprep.subr.mxu0 0.0
    %263 = vmatpush2.msra.mxu0 0.0
    %264 = vmatprep.subr.mxu0 0.0
    %265 = vmatpush2.msra.mxu0 0.0
    %266 = vmatprep.subr.mxu0 0.0
    %267 = vmatpush2.msra.mxu0 0.0
    %268 = vmatprep.subr.mxu0 0.0
    %269 = vmatpush2.msra.mxu0 0.0
    %270 = vmatprep.subr.mxu0 0.0
    %271 = vmatpush2.msra.mxu0 0.0
    %272 = vmatprep.subr.mxu0 0.0
    %273 = vmatpush2.msra.mxu0 0.0
    %274 = vmatprep.subr.mxu0 0.0
    %275 = vmatpush2.msra.mxu0 0.0
    %276 = vmatprep.subr.mxu0 0.0
    %277 = vmatpush2.msra.mxu0 0.0
    %278 = vmatprep.subr.mxu0 0.0
    %279 = vmatpush2.msra.mxu0 0.0
    %280 = vmatprep.subr.mxu0 0.0
    %281 = vmatpush2.msra.mxu0 0.0
    %282 = vmatprep.subr.mxu0 0.0
    %283 = vmatpush2.msra.mxu0 0.0
    %284 = vmatprep.subr.mxu0 0.0
    %285 = vmatpush2.msra.mxu0 0.0
    %286 = vmatprep.mubr.f32.mxu0 0.0
    %287 = vmatmul.mubr.f32.gmra.mxu0 %v216
    %v288 = vpop.f32.mrf.mxu0
    %v289 = vadd.f32 0.0, %v288
    %v290 = vpop.f32.mrf.mxu0
    %291 = vdwg.mxu0
    %vm292 = vcmask 261120
    %v294 = vsel %vm292, %v289, 0
    %v297 = vsel %vm292, %v31, 0
    %v300 = vsel %vm292, %v32, 0
    %v303 = vsel %vm292, %v33, 0
    %v306 = vsel %vm292, %v34, 0
    %v309 = vsel %vm292, %v35, 0
    %v312 = vsel %vm292, %v36, 0
    %v315 = vsel %vm292, %v37, 0
    %317 = vmatprep.subr.mxu0 0.0
    %318 = vmatpush1.xpose.msra.mxu0 0.0
    %319 = vmatprep.subr.mxu0 0.0
    %320 = vmatpush1.xpose.msra.mxu0 0.0
    %321 = vmatprep.subr.mxu0 0.0
    %322 = vmatpush1.xpose.msra.mxu0 0.0
    %323 = vmatprep.subr.mxu0 0.0
    %324 = vmatpush1.xpose.msra.mxu0 0.0
    %325 = vmatprep.subr.mxu0 0.0
    %326 = vmatpush1.xpose.msra.mxu0 0.0
    %327 = vmatprep.subr.mxu0 0.0
    %328 = vmatpush1.xpose.msra.mxu0 0.0
    %329 = vmatprep.subr.mxu0 0.0
    %330 = vmatpush1.xpose.msra.mxu0 0.0
    %331 = vmatprep.subr.mxu0 0.0
    %332 = vmatpush1.xpose.msra.mxu0 0.0
    %333 = vmatprep.subr.mxu0 0.0
    %334 = vmatpush1.xpose.msra.mxu0 0.0
    %335 = vmatprep.subr.mxu0 0.0
    %336 = vmatpush1.xpose.msra.mxu0 %v315
    %337 = vmatprep.subr.mxu0 0.0
    %338 = vmatpush1.xpose.msra.mxu0 %v312
    %339 = vmatprep.subr.mxu0 0.0
    %340 = vmatpush1.xpose.msra.mxu0 %v309
    %341 = vmatprep.subr.mxu0 0.0
    %342 = vmatpush1.xpose.msra.mxu0 %v306
    %343 = vmatprep.subr.mxu0 0.0
    %344 = vmatpush1.xpose.msra.mxu0 %v303
    %345 = vmatprep.subr.mxu0 0.0
    %346 = vmatpush1.xpose.msra.mxu0 %v300
    %347 = vmatprep.subr.mxu0 0.0
    %348 = vmatpush1.xpose.msra.mxu0 %v297
    %349 = vmatprep.subr.mxu0 0.0
    %350 = vmatpush2.xpose.msra.mxu0 0.0
    %351 = vmatprep.subr.mxu0 0.0
    %352 = vmatpush2.xpose.msra.mxu0 0.0
    %353 = vmatprep.subr.mxu0 0.0
    %354 = vmatpush2.xpose.msra.mxu0 0.0
    %355 = vmatprep.subr.mxu0 0.0
    %356 = vmatpush2.xpose.msra.mxu0 0.0
    %357 = vmatprep.subr.mxu0 0.0
    %358 = vmatpush2.xpose.msra.mxu0 0.0
    %359 = vmatprep.subr.mxu0 0.0
    %360 = vmatpush2.xpose.msra.mxu0 0.0
    %361 = vmatprep.subr.mxu0 0.0
    %362 = vmatpush2.xpose.msra.mxu0 0.0
    %363 = vmatprep.subr.mxu0 0.0
    %364 = vmatpush2.xpose.msra.mxu0 0.0
    %365 = vmatprep.subr.mxu0 0.0
    %366 = vmatpush2.xpose.msra.mxu0 0.0
    %367 = vmatprep.subr.mxu0 0.0
    %368 = vmatpush2.xpose.msra.mxu0 0.0
    %369 = vmatprep.subr.mxu0 0.0
    %370 = vmatpush2.xpose.msra.mxu0 0.0
    %371 = vmatprep.subr.mxu0 0.0
    %372 = vmatpush2.xpose.msra.mxu0 0.0
    %373 = vmatprep.subr.mxu0 0.0
    %374 = vmatpush2.xpose.msra.mxu0 0.0
    %375 = vmatprep.subr.mxu0 0.0
    %376 = vmatpush2.xpose.msra.mxu0 0.0
    %377 = vmatprep.subr.mxu0 0.0
    %378 = vmatpush2.xpose.msra.mxu0 0.0
    %379 = vmatprep.subr.mxu0 0.0
    %380 = vmatpush2.xpose.msra.mxu0 0.0
    %381 = vmatprep.mubr.f32.mxu0 0.0
    %382 = vmatmul.mubr.f32.gmra.mxu0 %v294
    %v383 = vpop.f32.mrf.mxu0
    %v384 = vadd.f32 0.0, %v383
    %v385 = vpop.f32.mrf.mxu0
    %386 = vdwg.mxu0
    %v387 = vmin.f32 %v384, 0.0
    %v388 = vand.u32 2147483647, %v384
    %v389 = vsub.f32 0.0, %v388
    %v390 = vmul.f32 %v389, 1.442695
    %v391 = vpow.pop %v390
    %v392 = vadd.f32 %v391, 1.0
    %v393 = vlog2.pop %v392
    %v394 = vmul.f32 %v393, 0.6931472
    %v395 = vmul.f32 -0.5, %v391
    %v396 = vadd.f32 %v395, 1.0
    %v397 = vmul.f32 %v396, %v391
    %v398 = vand.u32 2147483647, %v391
    %vm399 = vcmp.lt.f32.partialorder %v398, 0.0004427343
    %v400 = vsel %vm399, %v397, %v394
    %v401 = vsub.f32 %v387, %v400
    %v402 = vsub.f32 0.0, %v384
    %v403 = vmin.f32 %v402, 0.0
    %v404 = vand.u32 2147483647, %v402
    %v405 = vsub.f32 0.0, %v404
    %v406 = vmul.f32 %v405, 1.442695
    %v407 = vpow.pop %v406
    %v408 = vadd.f32 %v407, 1.0
    %v409 = vlog2.pop %v408
    %v410 = vmul.f32 %v409, 0.6931472
    %v411 = vmul.f32 -0.5, %v407
    %v412 = vadd.f32 %v411, 1.0
    %v413 = vmul.f32 %v412, %v407
    %v414 = vand.u32 2147483647, %v407
    %vm415 = vcmp.lt.f32.partialorder %v414, 0.0004427343
    %v416 = vsel %vm415, %v413, %v410
    %v417 = vsub.f32 %v403, %v416
    %418 = vset.pattern.permute.xlu0 0
    %419 = vperm.xlu0 %418, %v23
    %v420 = vpop.permute.xlu0 %419
    %vm421 = vcmp.eq.s32.totalorder %v420, %v103
    %v422 = vsel %vm421, 1, 0
    %v423 = vcvt.s32.f32 %v422
    %v424 = vlaneseq
    %v425 = vshrl.u32 %v424, 7
    %v426 = vsub.s32 0, %v425
    %v427 = vrot.slane %v22, %v426
    %429 = vbcast.lane.b32.xlu0 %v427, 256
    %v430 = vpop.permute.xlu0 %429
    %v431 = vlaneseq
    %v432 = vshrl.u32 %v431, 7
    %v433 = vsub.s32 1, %v432
    %v434 = vrot.slane %v22, %v433
    %436 = vbcast.lane.b32.xlu0 %v434, 256
    %v437 = vpop.permute.xlu0 %436
    %v438 = vlaneseq
    %v439 = vshrl.u32 %v438, 7
    %v440 = vsub.s32 2, %v439
    %v441 = vrot.slane %v22, %v440
    %443 = vbcast.lane.b32.xlu0 %v441, 256
    %v444 = vpop.permute.xlu0 %443
    %v445 = vlaneseq
    %v446 = vshrl.u32 %v445, 7
    %v447 = vsub.s32 3, %v446
    %v448 = vrot.slane %v22, %v447
    %450 = vbcast.lane.b32.xlu0 %v448, 256
    %v451 = vpop.permute.xlu0 %450
    %v452 = vlaneseq
    %v453 = vshrl.u32 %v452, 7
    %v454 = vsub.s32 4, %v453
    %v455 = vrot.slane %v22, %v454
    %457 = vbcast.lane.b32.xlu0 %v455, 256
    %v458 = vpop.permute.xlu0 %457
    %v459 = vlaneseq
    %v460 = vshrl.u32 %v459, 7
    %v461 = vsub.s32 5, %v460
    %v462 = vrot.slane %v22, %v461
    %464 = vbcast.lane.b32.xlu0 %v462, 256
    %v465 = vpop.permute.xlu0 %464
    %v466 = vlaneseq
    %v467 = vshrl.u32 %v466, 7
    %v468 = vsub.s32 6, %v467
    %v469 = vrot.slane %v22, %v468
    %471 = vbcast.lane.b32.xlu0 %v469, 256
    %v472 = vpop.permute.xlu0 %471
    %v473 = vlaneseq
    %v474 = vshrl.u32 %v473, 7
    %v475 = vsub.s32 7, %v474
    %v476 = vrot.slane %v22, %v475
    %478 = vbcast.lane.b32.xlu0 %v476, 256
    %v479 = vpop.permute.xlu0 %478
    %vm480 = vcmp.eq.s32.totalorder %v430, %v103
    %vm481 = vcmp.eq.s32.totalorder %v437, %v103
    %vm482 = vcmp.eq.s32.totalorder %v444, %v103
    %vm483 = vcmp.eq.s32.totalorder %v451, %v103
    %vm484 = vcmp.eq.s32.totalorder %v458, %v103
    %vm485 = vcmp.eq.s32.totalorder %v465, %v103
    %vm486 = vcmp.eq.s32.totalorder %v472, %v103
    %vm487 = vcmp.eq.s32.totalorder %v479, %v103
    %v488 = vsel %vm480, 1, 0
    %v489 = vsel %vm481, 1, 0
    %v490 = vsel %vm482, 1, 0
    %v491 = vsel %vm483, 1, 0
    %v492 = vsel %vm484, 1, 0
    %v493 = vsel %vm485, 1, 0
    %v494 = vsel %vm486, 1, 0
    %v495 = vsel %vm487, 1, 0
    %v496 = vcvt.s32.f32 %v488
    %v497 = vcvt.s32.f32 %v489
    %v498 = vcvt.s32.f32 %v490
    %v499 = vcvt.s32.f32 %v491
    %v500 = vcvt.s32.f32 %v492
    %v501 = vcvt.s32.f32 %v493
    %v502 = vcvt.s32.f32 %v494
    %v503 = vcvt.s32.f32 %v495
    %vm504 = vcmask 405504
    %v505 = vsel %vm504, %v496, 0.0
    %v506 = vrot.slane %v505, 4
    %v507 = vadd.f32 %v505, %v506
    %v508 = vrot.slane %v507, 2
    %v509 = vadd.f32 %v507, %v508
    %v510 = vrot.slane %v509, 1
    %v511 = vadd.f32 %v509, %v510
    %v512 = vsel %vm504, %v497, 0.0
    %v513 = vrot.slane %v512, 4
    %v514 = vadd.f32 %v512, %v513
    %v515 = vrot.slane %v514, 2
    %v516 = vadd.f32 %v514, %v515
    %v517 = vrot.slane %v516, 1
    %v518 = vadd.f32 %v516, %v517
    %v519 = vsel %vm504, %v498, 0.0
    %v520 = vrot.slane %v519, 4
    %v521 = vadd.f32 %v519, %v520
    %v522 = vrot.slane %v521, 2
    %v523 = vadd.f32 %v521, %v522
    %v524 = vrot.slane %v523, 1
    %v525 = vadd.f32 %v523, %v524
    %v526 = vsel %vm504, %v499, 0.0
    %v527 = vrot.slane %v526, 4
    %v528 = vadd.f32 %v526, %v527
    %v529 = vrot.slane %v528, 2
    %v530 = vadd.f32 %v528, %v529
    %v531 = vrot.slane %v530, 1
    %v532 = vadd.f32 %v530, %v531
    %v533 = vsel %vm504, %v500, 0.0
    %v534 = vrot.slane %v533, 4
    %v535 = vadd.f32 %v533, %v534
    %v536 = vrot.slane %v535, 2
    %v537 = vadd.f32 %v535, %v536
    %v538 = vrot.slane %v537, 1
    %v539 = vadd.f32 %v537, %v538
    %v540 = vsel %vm504, %v501, 0.0
    %v541 = vrot.slane %v540, 4
    %v542 = vadd.f32 %v540, %v541
    %v543 = vrot.slane %v542, 2
    %v544 = vadd.f32 %v542, %v543
    %v545 = vrot.slane %v544, 1
    %v546 = vadd.f32 %v544, %v545
    %v547 = vsel %vm504, %v502, 0.0
    %v548 = vrot.slane %v547, 4
    %v549 = vadd.f32 %v547, %v548
    %v550 = vrot.slane %v549, 2
    %v551 = vadd.f32 %v549, %v550
    %v552 = vrot.slane %v551, 1
    %v553 = vadd.f32 %v551, %v552
    %v554 = vsel %vm504, %v503, 0.0
    %v555 = vrot.slane %v554, 4
    %v556 = vadd.f32 %v554, %v555
    %v557 = vrot.slane %v556, 2
    %v558 = vadd.f32 %v556, %v557
    %v559 = vrot.slane %v558, 1
    %v560 = vadd.f32 %v558, %v559
    %v561 = vmul.f32 %v423, %v401
    %v563 = vrot.slane %v417, 1
    %v564 = vrot.slane %v417, 2
    %v565 = vrot.slane %v417, 3
    %v566 = vrot.slane %v417, 4
    %v567 = vrot.slane %v417, 5
    %v568 = vrot.slane %v417, 6
    %v569 = vrot.slane %v417, 7
    %v578 = vmul.f32 %v511, %v417
    %v579 = vmul.f32 %v518, %v563
    %v580 = vmul.f32 %v525, %v564
    %v581 = vmul.f32 %v532, %v565
    %v582 = vmul.f32 %v539, %v566
    %v583 = vmul.f32 %v546, %v567
    %v584 = vmul.f32 %v553, %v568
    %v585 = vmul.f32 %v560, %v569
    %v594 = vrot.slane %v579, 7
    %v595 = vsel %vm201, %v594, %v578
    %v596 = vrot.slane %v580, 6
    %v597 = vsel %vm203, %v596, %v595
    %v598 = vrot.slane %v581, 5
    %v599 = vsel %vm205, %v598, %v597
    %v600 = vrot.slane %v582, 4
    %v601 = vsel %vm207, %v600, %v599
    %v602 = vrot.slane %v583, 3
    %v603 = vsel %vm209, %v602, %v601
    %v604 = vrot.slane %v584, 2
    %v605 = vsel %vm211, %v604, %v603
    %v606 = vrot.slane %v585, 1
    %v607 = vsel %vm213, %v606, %v605
    %v609 = vadd.f32 %v561, %v607
    %v610 = vsel %vm215, %v609, 0.0
    %611 = vadd.xlane.f32.xlu0 %v610
    %v612 = vpop.xlane.xlu0 %611
    %v613 = vmul.f32 %v612, %v45
    %vm614 = vcmask 7168
    %v615 = vsel %vm614, %v613, 0.0
    %616 = vadd.xlane.f32.xlu0 %v615
    %v617 = vpop.xlane.xlu0 %616
    %v618 = vrot.slane %v617, 4
    %v619 = vadd.f32 %v617, %v618
    %v620 = vrot.slane %v619, 2
    %v621 = vadd.f32 %v619, %v620
    %v622 = vrot.slane %v621, 1
    %v623 = vadd.f32 %v621, %v622
    %s624 = vtos %v623
    %v625 = vstv %s624
    %626 = vst [vmem:[#allocation2] sm:$0xff] %v625
    // Predicated region
    $region22: #{tpu_custom_call.1} parent=1 // pred_check
      _
    $region23: #{tpu_custom_call.1} parent=1 // pred_check_branch
      %628 = sbr.rel (0) target = $region25
    $region24: #{tpu_custom_call.1} parent=1 // pred_region
      %s630 = ssub.s32 128, 128
      %631 = vsyncadd [#allocation3], %s630
      %s633 = sshll.u32 [#allocation2], 4
      %s634 = int_to_ptr.vmem [resolvable:$true] %s633
      %636 = dma.vmem_to_hbm [thread:$0]  %s634, 128, %s5, [#allocation3]
    $region25: #{tpu_custom_call.1} parent=1 // pred_fallthru
      _
    // Predicated region
    $region26: #{tpu_custom_call.1} parent=1 // pred_check
      _
    $region27: #{tpu_custom_call.1} parent=1 // pred_check_branch
      %638 = sbr.rel (0) target = $region29
    $region28: #{tpu_custom_call.1} parent=1 // pred_region
      %639 = dma.done [#allocation3], 128
    $region29: #{tpu_custom_call.1} parent=1 // pred_fallthru
      _
    %640 = vsyncpa [#allocation3], 1

</llo_original>
